<compile_context>
chip_gen: v5e
topology: v5e:2x2
jax: 0.10.0
libtpu: 0.0.40
codegen_flags: <defaults>
</compile_context>

<pallas_src>
import math

import jax
import jax.numpy as jnp
from jax import lax
from jax.experimental import pallas as pl
from jax.experimental.pallas import tpu as pltpu


def _round_up(a, b):
    return ((a + b - 1) // b) * b


def _pad2(a, rows, cols):
    return jnp.pad(a, ((0, rows - a.shape[0]), (0, cols - a.shape[1])))


def noisy_linear_kernel(x_ref, wmu_ref, wsig_ref, eps_in_ref, eps_out_ref,
                        bias_ref, o_ref, acc_ref):
    """Grid = (M tiles, N tiles, K tiles); K is the reduction axis.

    x_ref:       (tm, tk)   input tile
    wmu_ref:     (tn, tk)   weight_mu tile      (out, in) layout
    wsig_ref:    (tn, tk)   weight_sigma tile   (out, in) layout
    eps_in_ref:  (1,  tk)   factorized input noise slice
    eps_out_ref: (1,  tn)   factorized output noise slice
    bias_ref:    (1,  tn)   fused noisy bias (bias_mu + bias_sigma * eps_out)
    o_ref:       (tm, tn)   output tile (resident across K)
    acc_ref:     (tm, tn)   f32 accumulator scratch
    """
    k = pl.program_id(2)

    @pl.when(k == 0)
    def _():
        acc_ref[...] = jnp.zeros_like(acc_ref)

    x = x_ref[...]                               # (tm, tk) f32
    x_noisy = x * eps_in_ref[...]                # scale by eps_in (VPU, tm*tk)

    # Contract the shared in_features axis of (tm, tk) x (tn, tk) -> (tm, tn).
    # Equivalent to x @ W^T without materializing a transposed weight copy.
    dn = (((1,), (1,)), ((), ()))
    y_mu = lax.dot_general(x, wmu_ref[...], dimension_numbers=dn,
                           preferred_element_type=jnp.float32)
    y_sig = lax.dot_general(x_noisy, wsig_ref[...], dimension_numbers=dn,
                            preferred_element_type=jnp.float32)

    # eps_out column scaling distributes over the K-sum, so applying it per
    # K-step keeps a single accumulator.
    acc_ref[...] += y_mu + y_sig * eps_out_ref[...]

    @pl.when(k == pl.num_programs(2) - 1)
    def _():
        o_ref[...] = (acc_ref[...] + bias_ref[...]).astype(o_ref.dtype)


def noisy_linear_forward(x, weight_mu, weight_sigma, bias_mu, bias_sigma,
                         eps_in, eps_out):
    """Training-mode NoisyLinear forward.  All args float32.

    x:            (B, in_features)
    weight_mu:    (out_features, in_features)
    weight_sigma: (out_features, in_features)
    bias_mu:      (out_features,)
    bias_sigma:   (out_features,)
    eps_in:       (in_features,)
    eps_out:      (out_features,)
    returns:      (B, out_features)
    """
    B, in_f = x.shape
    out_f = weight_mu.shape[0]

    # Tile sizes: lane-dense (last dim multiple of 128, sublane multiple of 8),
    # sized so double-buffered W_mu + W_sigma tiles + x + out + acc stay well
    # under scoped VMEM on every generation (v5e 16 MiB scoped, v7x 64 MiB
    # physical):  128x512 + 2*(256x512) + 128x256 f32, double-buffered ~ 3 MiB.
    tm = min(128, _round_up(B, 8))
    tn = min(256, _round_up(out_f, 128))
    tk = min(512, _round_up(in_f, 128))

    b_p = _round_up(B, tm)
    out_p = _round_up(out_f, tn)
    in_p = _round_up(in_f, tk)

    # Noisy bias does not depend on x -> fold once per call (hoist; it is
    # reused for every row of the batch and every K step).
    bias = (bias_mu + bias_sigma * eps_out).reshape(1, out_f)

    x_p = _pad2(x, b_p, in_p)
    wmu_p = _pad2(weight_mu, out_p, in_p)
    wsig_p = _pad2(weight_sigma, out_p, in_p)
    ein_p = _pad2(eps_in.reshape(1, in_f), 1, in_p)
    eout_p = _pad2(eps_out.reshape(1, out_f), 1, out_p)
    bias_p = _pad2(bias, 1, out_p)

    grid = (b_p // tm, out_p // tn, in_p // tk)

    out = pl.pallas_call(
        noisy_linear_kernel,
        out_shape=jax.ShapeDtypeStruct((b_p, out_p), x.dtype),
        grid=grid,
        in_specs=[
            pl.BlockSpec((tm, tk), lambda i, j, k: (i, k)),   # x
            pl.BlockSpec((tn, tk), lambda i, j, k: (j, k)),   # weight_mu
            pl.BlockSpec((tn, tk), lambda i, j, k: (j, k)),   # weight_sigma
            pl.BlockSpec((1, tk), lambda i, j, k: (0, k)),    # eps_in row
            pl.BlockSpec((1, tn), lambda i, j, k: (0, j)),    # eps_out row
            pl.BlockSpec((1, tn), lambda i, j, k: (0, j)),    # fused noisy bias
        ],
        out_specs=pl.BlockSpec((tm, tn), lambda i, j, k: (i, j)),
        scratch_shapes=[pltpu.VMEM((tm, tn), jnp.float32)],
        compiler_params=pltpu.CompilerParams(
            dimension_semantics=("parallel", "parallel", "arbitrary"),
            vmem_limit_bytes=32 * 1024 * 1024,
        ),
    )(x_p, wmu_p, wsig_p, ein_p, eout_p, bias_p)

    return out[:B, :out_f]


def scale_noise(key, size):
    """PyTorch _scale_noise: sign(x) * sqrt(|x|) with x ~ N(0, 1)."""
    v = jax.random.normal(key, (size,), dtype=jnp.float32)
    return jnp.sign(v) * jnp.sqrt(jnp.abs(v))


if __name__ == "__main__":
    sigma_init = 0.017

    def ref_forward(x, wmu, wsig, bmu, bsig, ein, eout):
        w = wmu + wsig * jnp.outer(eout, ein)
        b = bmu + bsig * eout
        return jnp.dot(x, w.T, precision=lax.Precision.HIGHEST) + b

    key = jax.random.PRNGKey(0)

    # (batch, in_features, out_features): the original toy shape plus one
    # multi-tile / padded case that exercises the K reduction and N tiling.
    for batch, in_f, out_f in [(4, 32, 64), (48, 640, 384)]:
        key, k_x, k_wmu, k_bmu, k_ein, k_eout = jax.random.split(key, 6)

        mu_range = 1.0 / math.sqrt(in_f)
        weight_mu = jax.random.uniform(k_wmu, (out_f, in_f),
                                       minval=-mu_range, maxval=mu_range,
                                       dtype=jnp.float32)
        bias_mu = jax.random.uniform(k_bmu, (out_f,),
                                     minval=-mu_range, maxval=mu_range,
                                     dtype=jnp.float32)
        weight_sigma = jnp.full((out_f, in_f), sigma_init, jnp.float32)
        bias_sigma = jnp.full((out_f,), sigma_init, jnp.float32)

        eps_in = scale_noise(k_ein, in_f)
        eps_out = scale_noise(k_eout, out_f)

        x = jax.random.normal(k_x, (batch, in_f), dtype=jnp.float32)

        y = noisy_linear_forward(x, weight_mu, weight_sigma,
                                 bias_mu, bias_sigma, eps_in, eps_out)
        y = jax.block_until_ready(y)

        y_ref = ref_forward(x, weight_mu, weight_sigma,
                            bias_mu, bias_sigma, eps_in, eps_out)

        assert y.shape == (batch, out_f)
        max_err = float(jnp.max(jnp.abs(y - y_ref)))
        assert jnp.allclose(y, y_ref, atol=1e-4, rtol=1e-4), max_err

    print("KERNEL_OK")
</pallas_src>

<mosaic_0001>
module attributes {stable_mosaic.version = 11 : i64} {
  func.func @noisy_linear_kernel(%arg0: i32, %arg1: i32, %arg2: i32, %arg3: memref<8x128xf32, #tpu.memory_space<vmem>>, %arg4: memref<128x128xf32, #tpu.memory_space<vmem>>, %arg5: memref<128x128xf32, #tpu.memory_space<vmem>>, %arg6: memref<1x128xf32, #tpu.memory_space<vmem>>, %arg7: memref<1x128xf32, #tpu.memory_space<vmem>>, %arg8: memref<1x128xf32, #tpu.memory_space<vmem>>, %arg9: memref<8x128xf32, #tpu.memory_space<vmem>>, %arg10: memref<8x128xf32, #tpu.memory_space<vmem>>) attributes {dimension_semantics = [#tpu.dimension_semantics<parallel>, #tpu.dimension_semantics<parallel>, #tpu.dimension_semantics<arbitrary>], iteration_bounds = array<i64: 1, 1, 1>, scalar_prefetch = 0 : i64, scratch_operands = 1 : i64, tpu.core_type = #tpu.core_type<tc>, window_params = [{transform_indices = @transform_0, window_bounds = array<i64: 8, 128>}, {transform_indices = @transform_1, window_bounds = array<i64: 128, 128>}, {transform_indices = @transform_2, window_bounds = array<i64: 128, 128>}, {transform_indices = @transform_3, window_bounds = array<i64: 1, 128>}, {transform_indices = @transform_4, window_bounds = array<i64: 1, 128>}, {transform_indices = @transform_5, window_bounds = array<i64: 1, 128>}, {transform_indices = @transform_6, window_bounds = array<i64: 8, 128>}]} {
    %c0_i32 = arith.constant 0 : i32
    %0 = arith.cmpi eq, %arg2, %c0_i32 : i32
    %1 = arith.extui %0 : i1 to i32
    %c0_i32_0 = arith.constant 0 : i32
    %2 = arith.cmpi ne, %1, %c0_i32_0 : i32
    scf.if %2 {
      %cst_17 = arith.constant 0.000000e+00 : f32
      %21 = vector.broadcast %cst_17 : f32 to vector<8x128xf32>
      %c0_18 = arith.constant 0 : index
      %c0_19 = arith.constant 0 : index
      %22 = vector.load %arg10[%c0_18, %c0_19] : memref<8x128xf32, #tpu.memory_space<vmem>>, vector<8x128xf32>
      tpu.vector_store %arg10[%c0_18, %c0_19], %21 {strides = array<i32>} : memref<8x128xf32, #tpu.memory_space<vmem>>, vector<8x128xf32>,
    } else {
    }
    %c0 = arith.constant 0 : index
    %c0_1 = arith.constant 0 : index
    %3 = vector.load %arg3[%c0, %c0_1] : memref<8x128xf32, #tpu.memory_space<vmem>>, vector<8x128xf32>
    %c0_2 = arith.constant 0 : index
    %c0_3 = arith.constant 0 : index
    %4 = vector.load %arg6[%c0_2, %c0_3] : memref<1x128xf32, #tpu.memory_space<vmem>>, vector<1x128xf32>
    %5 = vector.broadcast %4 : vector<1x128xf32> to vector<8x128xf32>
    %6 = arith.mulf %3, %5 : vector<8x128xf32>
    %c0_4 = arith.constant 0 : index
    %c0_5 = arith.constant 0 : index
    %7 = vector.load %arg4[%c0_4, %c0_5] : memref<128x128xf32, #tpu.memory_space<vmem>>, vector<128x128xf32>
    %cst = arith.constant dense<0.000000e+00> : vector<8x128xf32>
    %8 = tpu.matmul %3, %7, %cst {dimension_numbers = #tpu.dot_dimension_numbers<[1], [1], [0], [0], [0, 0, 1, 0], [], []>} : vector<8x128xf32>, vector<128x128xf32>, vector<8x128xf32> -> vector<8x128xf32>
    %c0_6 = arith.constant 0 : index
    %c0_7 = arith.constant 0 : index
    %9 = vector.load %arg5[%c0_6, %c0_7] : memref<128x128xf32, #tpu.memory_space<vmem>>, vector<128x128xf32>
    %cst_8 = arith.constant dense<0.000000e+00> : vector<8x128xf32>
    %10 = tpu.matmul %6, %9, %cst_8 {dimension_numbers = #tpu.dot_dimension_numbers<[1], [1], [0], [0], [0, 0, 1, 0], [], []>} : vector<8x128xf32>, vector<128x128xf32>, vector<8x128xf32> -> vector<8x128xf32>
    %c0_9 = arith.constant 0 : index
    %c0_10 = arith.constant 0 : index
    %11 = vector.load %arg10[%c0_9, %c0_10] : memref<8x128xf32, #tpu.memory_space<vmem>>, vector<8x128xf32>
    %c0_11 = arith.constant 0 : index
    %c0_12 = arith.constant 0 : index
    %12 = vector.load %arg7[%c0_11, %c0_12] : memref<1x128xf32, #tpu.memory_space<vmem>>, vector<1x128xf32>
    %13 = vector.broadcast %12 : vector<1x128xf32> to vector<8x128xf32>
    %14 = arith.mulf %10, %13 : vector<8x128xf32>
    %15 = arith.addf %8, %14 : vector<8x128xf32>
    %16 = arith.addf %11, %15 : vector<8x128xf32>
    %c0_13 = arith.constant 0 : index
    %c0_14 = arith.constant 0 : index
    %17 = vector.load %arg10[%c0_13, %c0_14] : memref<8x128xf32, #tpu.memory_space<vmem>>, vector<8x128xf32>
    tpu.vector_store %arg10[%c0_13, %c0_14], %16 {strides = array<i32>} : memref<8x128xf32, #tpu.memory_space<vmem>>, vector<8x128xf32>,
    %c0_i32_15 = arith.constant 0 : i32
    %18 = arith.cmpi eq, %arg2, %c0_i32_15 : i32
    %19 = arith.extui %18 : i1 to i32
    %c0_i32_16 = arith.constant 0 : i32
    %20 = arith.cmpi ne, %19, %c0_i32_16 : i32
    scf.if %20 {
      %c0_17 = arith.constant 0 : index
      %c0_18 = arith.constant 0 : index
      %21 = vector.load %arg10[%c0_17, %c0_18] : memref<8x128xf32, #tpu.memory_space<vmem>>, vector<8x128xf32>
      %c0_19 = arith.constant 0 : index
      %c0_20 = arith.constant 0 : index
      %22 = vector.load %arg8[%c0_19, %c0_20] : memref<1x128xf32, #tpu.memory_space<vmem>>, vector<1x128xf32>
      %23 = vector.broadcast %22 : vector<1x128xf32> to vector<8x128xf32>
      %24 = arith.addf %21, %23 : vector<8x128xf32>
      %c0_21 = arith.constant 0 : index
      %c0_22 = arith.constant 0 : index
      %25 = vector.load %arg9[%c0_21, %c0_22] : memref<8x128xf32, #tpu.memory_space<vmem>>, vector<8x128xf32>
      tpu.vector_store %arg9[%c0_21, %c0_22], %24 {strides = array<i32>} : memref<8x128xf32, #tpu.memory_space<vmem>>, vector<8x128xf32>,
    } else {
    }
    return
  }
  func.func @transform_0(%arg0: i32, %arg1: i32, %arg2: i32) -> (i32, i32) {
    %c0_i32 = arith.constant 0 : i32
    return %arg0, %arg2 : i32, i32
  }
  func.func @transform_1(%arg0: i32, %arg1: i32, %arg2: i32) -> (i32, i32) {
    %c0_i32 = arith.constant 0 : i32
    return %arg1, %arg2 : i32, i32
  }
  func.func @transform_2(%arg0: i32, %arg1: i32, %arg2: i32) -> (i32, i32) {
    %c0_i32 = arith.constant 0 : i32
    return %arg1, %arg2 : i32, i32
  }
  func.func @transform_3(%arg0: i32, %arg1: i32, %arg2: i32) -> (i32, i32) {
    %c0_i32 = arith.constant 0 : i32
    %c0_i32_0 = arith.constant 0 : i32
    return %c0_i32, %arg2 : i32, i32
  }
  func.func @transform_4(%arg0: i32, %arg1: i32, %arg2: i32) -> (i32, i32) {
    %c0_i32 = arith.constant 0 : i32
    %c0_i32_0 = arith.constant 0 : i32
    return %c0_i32, %arg1 : i32, i32
  }
  func.func @transform_5(%arg0: i32, %arg1: i32, %arg2: i32) -> (i32, i32) {
    %c0_i32 = arith.constant 0 : i32
    %c0_i32_0 = arith.constant 0 : i32
    return %c0_i32, %arg1 : i32, i32
  }
  func.func @transform_6(%arg0: i32, %arg1: i32, %arg2: i32) -> (i32, i32) {
    %c0_i32 = arith.constant 0 : i32
    return %arg0, %arg1 : i32, i32
  }
}

</mosaic_0001>

<llo_original>
// kernel: tpu_custom_call.1
$region0: #{tpu_custom_call.1}
  #allocation0 [shape = 'u32[]', space=smem, size = 0x4, offset = 0x4, fixed_abs, tag = 'smem constant byte address 0x4 - core index']
  #allocation1 [shape = 'u32[72,128]{1,0:T(1,128)}', space=vmem, size = 0x9000, scoped, tag = 'internal scratch']
  #allocation2 [shape = 'f32[8,128]{1,0:T(8,128)}', space=vmem, size = 0x1000, scoped, tag = 'scratch operand']
  %s0 = inlined_call_operand.hbm [shape: f32[8,128], index: 0, kind: input, shape index: {}]
  %s1 = inlined_call_operand.hbm [shape: f32[128,128], index: 1, kind: input, shape index: {}]
  %s2 = inlined_call_operand.hbm [shape: f32[128,128], index: 2, kind: input, shape index: {}]
  %s3 = inlined_call_operand.vmem [shape: f32[1,128], index: 3, kind: input, shape index: {}]
  %s4 = inlined_call_operand.vmem [shape: f32[1,128], index: 4, kind: input, shape index: {}]
  %s5 = inlined_call_operand.vmem [shape: f32[1,128], index: 5, kind: input, shape index: {}]
  %s6 = inlined_call_operand.hbm [shape: f32[8,128], index: 6, kind: output, shape index: {}]
  %s7 = sld [smem:[#allocation0]]
  $region54: #{tpu_custom_call.1} parent=0
    _
  %s9 = ssub.s32 1, %s7
  %s10 = scalar_select 0, %s9, %s7
  $region1: #{tpu_custom_call.1} parent=0
    #allocation3 [shape = 'u8[4096]{0}', space=vmem, size = 0x1000, scoped, tag = 'input window, operand 0, single buffered']
    #allocation4 [shape = 's32[1]{0}', space=sflag, size = 0x4, scoped, tag = 'scoped memory for tpu_custom_call.1']
    #allocation5 [shape = 's32[1]{0}', space=sflag, size = 0x4, scoped, tag = 'scoped memory for tpu_custom_call.1']
    #allocation6 [shape = 'u8[65536]{0}', space=vmem, size = 0x10000, scoped, tag = 'input window, operand 1, single buffered']
    #allocation7 [shape = 's32[1]{0}', space=sflag, size = 0x4, scoped, tag = 'scoped memory for tpu_custom_call.1']
    #allocation8 [shape = 'u8[65536]{0}', space=vmem, size = 0x10000, scoped, tag = 'input window, operand 2, single buffered']
    #allocation9 [shape = 'u8[4096]{0}', space=vmem, size = 0x1000, scoped, tag = 'output window, operand 0, single buffered']
    %11 = vsyncpa [#allocation4], 0
    %12 = vsyncpa [#allocation7], 0
    %13 = vsyncpa [#allocation5], 0
    // Predicated region
    $region2: #{tpu_custom_call.1} parent=1 // pred_check
      _
    $region3: #{tpu_custom_call.1} parent=1 // pred_check_branch
      %15 = sbr.rel (0) target = $region5
    $region4: #{tpu_custom_call.1} parent=1 // pred_region
      %17 = vsyncadd [#allocation4], 0
      %s19 = sshll.u32 %s0, 4
      %s20 = int_to_ptr.hbm [resolvable:$true] %s19
      %s21 = sshll.u32 [#allocation3], 4
      %s22 = int_to_ptr.vmem [resolvable:$true] %s21
      %24 = dma.hbm_to_vmem [thread:$0]  %s20, 128, %s22, [#allocation4]
    $region5: #{tpu_custom_call.1} parent=1 // pred_fallthru
      _
    // Predicated region
    $region6: #{tpu_custom_call.1} parent=1 // pred_check
      _
    $region7: #{tpu_custom_call.1} parent=1 // pred_check_branch
      %26 = sbr.rel (0) target = $region9
    $region8: #{tpu_custom_call.1} parent=1 // pred_region
      %28 = vsyncadd [#allocation7], 0
      %s29 = sshll.u32 %s1, 4
      %s30 = int_to_ptr.hbm [resolvable:$true] %s29
      %s31 = sshll.u32 [#allocation6], 4
      %s32 = int_to_ptr.vmem [resolvable:$true] %s31
      %37 = dma.hbm_to_vmem [thread:$0]  %s30, 2048, %s32, [#allocation7], 128, 128, 8
    $region9: #{tpu_custom_call.1} parent=1 // pred_fallthru
      _
    // Predicated region
    $region10: #{tpu_custom_call.1} parent=1 // pred_check
      _
    $region11: #{tpu_custom_call.1} parent=1 // pred_check_branch
      %39 = sbr.rel (0) target = $region13
    $region12: #{tpu_custom_call.1} parent=1 // pred_region
      %41 = vsyncadd [#allocation7], 0
      %s42 = sshll.u32 %s2, 4
      %s43 = int_to_ptr.hbm [resolvable:$true] %s42
      %s44 = sshll.u32 [#allocation8], 4
      %s45 = int_to_ptr.vmem [resolvable:$true] %s44
      %50 = dma.hbm_to_vmem [thread:$0]  %s43, 2048, %s45, [#allocation7], 128, 128, 8
    $region13: #{tpu_custom_call.1} parent=1 // pred_fallthru
      _
    // Predicated region
    $region14: #{tpu_custom_call.1} parent=1 // pred_check
      _
    $region15: #{tpu_custom_call.1} parent=1 // pred_check_branch
      %52 = sbr.rel (0) target = $region17
    $region16: #{tpu_custom_call.1} parent=1 // pred_region
      _
    $region17: #{tpu_custom_call.1} parent=1 // pred_fallthru
      _
    // Predicated region
    $region18: #{tpu_custom_call.1} parent=1 // pred_check
      _
    $region19: #{tpu_custom_call.1} parent=1 // pred_check_branch
      %54 = sbr.rel (0) target = $region21
    $region20: #{tpu_custom_call.1} parent=1 // pred_region
      _
    $region21: #{tpu_custom_call.1} parent=1 // pred_fallthru
      _
    // Predicated region
    $region22: #{tpu_custom_call.1} parent=1 // pred_check
      _
    $region23: #{tpu_custom_call.1} parent=1 // pred_check_branch
      %56 = sbr.rel (0) target = $region25
    $region24: #{tpu_custom_call.1} parent=1 // pred_region
      _
    $region25: #{tpu_custom_call.1} parent=1 // pred_fallthru
      _
    // Predicated region
    $region26: #{tpu_custom_call.1} parent=1 // pred_check
      _
    $region27: #{tpu_custom_call.1} parent=1 // pred_check_branch
      %58 = sbr.rel (0) target = $region29
    $region28: #{tpu_custom_call.1} parent=1 // pred_region
      %60 = dma.done [#allocation4], 128
    $region29: #{tpu_custom_call.1} parent=1 // pred_fallthru
      _
    // Predicated region
    $region30: #{tpu_custom_call.1} parent=1 // pred_check
      _
    $region31: #{tpu_custom_call.1} parent=1 // pred_check_branch
      %62 = sbr.rel (0) target = $region33
    $region32: #{tpu_custom_call.1} parent=1 // pred_region
      %64 = dma.done [#allocation7], 2048
    $region33: #{tpu_custom_call.1} parent=1 // pred_fallthru
      _
    // Predicated region
    $region34: #{tpu_custom_call.1} parent=1 // pred_check
      _
    $region35: #{tpu_custom_call.1} parent=1 // pred_check_branch
      %66 = sbr.rel (0) target = $region37
    $region36: #{tpu_custom_call.1} parent=1 // pred_region
      %68 = dma.done [#allocation7], 2048
    $region37: #{tpu_custom_call.1} parent=1 // pred_fallthru
      _
    %p69 = scmp.eq.s32.totalorder 0, 0
    // Predicated region
    $region38: #{tpu_custom_call.1} parent=1 // pred_check
      %p70 = pneg %p69
    $region39: #{tpu_custom_call.1} parent=1 // pred_check_branch
      %72 = sbr.rel (%p70) target = $region41
    $region40: #{tpu_custom_call.1} parent=1 // pred_region
      %73 = vst [vmem:[#allocation2] sm:$0xff] 0.0
    $region41: #{tpu_custom_call.1} parent=1 // pred_fallthru
      _
    %v74 = vld [vmem:[#allocation3] sm:$0xff]
    %v75 = vld [vmem:[%s3] sm:$0x1]
    %v77 = vperm.slane %v75, 0
    %v79 = vmul.f32 %v74, %v77
    %v80 = vld [vmem:[#allocation6] sm:$0xff]
    %v81 = vld [vmem:[#allocation6 + $0x8] sm:$0xff]
    %v82 = vld [vmem:[#allocation6 + $0x10] sm:$0xff]
    %v83 = vld [vmem:[#allocation6 + $0x18] sm:$0xff]
    %v84 = vld [vmem:[#allocation6 + $0x20] sm:$0xff]
    %v85 = vld [vmem:[#allocation6 + $0x28] sm:$0xff]
    %v86 = vld [vmem:[#allocation6 + $0x30] sm:$0xff]
    %v87 = vld [vmem:[#allocation6 + $0x38] sm:$0xff]
    %v88 = vld [vmem:[#allocation6 + $0x40] sm:$0xff]
    %v89 = vld [vmem:[#allocation6 + $0x48] sm:$0xff]
    %v90 = vld [vmem:[#allocation6 + $0x50] sm:$0xff]
    %v91 = vld [vmem:[#allocation6 + $0x58] sm:$0xff]
    %v92 = vld [vmem:[#allocation6 + $0x60] sm:$0xff]
    %v93 = vld [vmem:[#allocation6 + $0x68] sm:$0xff]
    %v94 = vld [vmem:[#allocation6 + $0x70] sm:$0xff]
    %v95 = vld [vmem:[#allocation6 + $0x78] sm:$0xff]
    %v96 = vld [vmem:[#allocation8] sm:$0xff]
    %v97 = vld [vmem:[#allocation8 + $0x8] sm:$0xff]
    %v98 = vld [vmem:[#allocation8 + $0x10] sm:$0xff]
    %v99 = vld [vmem:[#allocation8 + $0x18] sm:$0xff]
    %v100 = vld [vmem:[#allocation8 + $0x20] sm:$0xff]
    %v101 = vld [vmem:[#allocation8 + $0x28] sm:$0xff]
    %v102 = vld [vmem:[#allocation8 + $0x30] sm:$0xff]
    %v103 = vld [vmem:[#allocation8 + $0x38] sm:$0xff]
    %v104 = vld [vmem:[#allocation8 + $0x40] sm:$0xff]
    %v105 = vld [vmem:[#allocation8 + $0x48] sm:$0xff]
    %v106 = vld [vmem:[#allocation8 + $0x50] sm:$0xff]
    %v107 = vld [vmem:[#allocation8 + $0x58] sm:$0xff]
    %v108 = vld [vmem:[#allocation8 + $0x60] sm:$0xff]
    %v109 = vld [vmem:[#allocation8 + $0x68] sm:$0xff]
    %v110 = vld [vmem:[#allocation8 + $0x70] sm:$0xff]
    %v111 = vld [vmem:[#allocation8 + $0x78] sm:$0xff]
    %112 = vmatpush.xpose.msra.mxu0 %v111
    %113 = vmatpush.xpose.msra.mxu0 %v110
    %114 = vmatpush.xpose.msra.mxu0 %v109
    %115 = vmatpush.xpose.msra.mxu0 %v108
    %116 = vmatpush.xpose.msra.mxu0 %v107
    %117 = vmatpush.xpose.msra.mxu0 %v106
    %118 = vmatpush.xpose.msra.mxu0 %v105
    %119 = vmatpush.xpose.msra.mxu0 %v104
    %120 = vmatpush.xpose.msra.mxu0 %v103
    %121 = vmatpush.xpose.msra.mxu0 %v102
    %122 = vmatpush.xpose.msra.mxu0 %v101
    %123 = vmatpush.xpose.msra.mxu0 %v100
    %124 = vmatpush.xpose.msra.mxu0 %v99
    %125 = vmatpush.xpose.msra.mxu0 %v98
    %126 = vmatpush.xpose.msra.mxu0 %v97
    %127 = vmatpush.xpose.msra.mxu0 %v96
    %128 = vmatmul.f32.gmra.mxu0 %v79
    %v129 = vpop.f32.mrf.mxu0
    %v130 = vadd.f32 0.0, %v129
    %131 = vdwg.mxu0
    %v132 = vld [vmem:[#allocation2] sm:$0xff]
    %v133 = vld [vmem:[%s4] sm:$0x1]
    %v135 = vperm.slane %v133, 0
    %v137 = vmul.f32 %v130, %v135
    %138 = vmatpush.xpose.msra.mxu0 %v95
    %139 = vmatpush.xpose.msra.mxu0 %v94
    %140 = vmatpush.xpose.msra.mxu0 %v93
    %141 = vmatpush.xpose.msra.mxu0 %v92
    %142 = vmatpush.xpose.msra.mxu0 %v91
    %143 = vmatpush.xpose.msra.mxu0 %v90
    %144 = vmatpush.xpose.msra.mxu0 %v89
    %145 = vmatpush.xpose.msra.mxu0 %v88
    %146 = vmatpush.xpose.msra.mxu0 %v87
    %147 = vmatpush.xpose.msra.mxu0 %v86
    %148 = vmatpush.xpose.msra.mxu0 %v85
    %149 = vmatpush.xpose.msra.mxu0 %v84
    %150 = vmatpush.xpose.msra.mxu0 %v83
    %151 = vmatpush.xpose.msra.mxu0 %v82
    %152 = vmatpush.xpose.msra.mxu0 %v81
    %153 = vmatpush.xpose.msra.mxu0 %v80
    %154 = vmatmul.f32.gmra.mxu0 %v74
    %v155 = vpop.f32.mrf.mxu0
    %v156 = vadd.f32 %v137, %v155
    %157 = vdwg.mxu0
    %v158 = vadd.f32 %v132, %v156
    %159 = vst [vmem:[#allocation2] sm:$0xff] %v158
    // Predicated region
    $region42: #{tpu_custom_call.1} parent=1 // pred_check
      %p160 = pneg %p69
    $region43: #{tpu_custom_call.1} parent=1 // pred_check_branch
      %162 = sbr.rel (%p160) target = $region45
    $region44: #{tpu_custom_call.1} parent=1 // pred_region
      %v163 = vld [vmem:[#allocation2] sm:$0xff]
      %v164 = vld [vmem:[%s5] sm:$0x1]
      %v166 = vperm.slane %v164, 0
      %v168 = vadd.f32 %v163, %v166
      %169 = vst [vmem:[#allocation9] sm:$0xff] %v168
    $region45: #{tpu_custom_call.1} parent=1 // pred_fallthru
      _
    // Predicated region
    $region46: #{tpu_custom_call.1} parent=1 // pred_check
      _
    $region47: #{tpu_custom_call.1} parent=1 // pred_check_branch
      %171 = sbr.rel (0) target = $region49
    $region48: #{tpu_custom_call.1} parent=1 // pred_region
      %173 = vsyncadd [#allocation5], 0
      %s175 = sshll.u32 [#allocation9], 4
      %s176 = int_to_ptr.vmem [resolvable:$true] %s175
      %s177 = sshll.u32 %s6, 4
      %s178 = int_to_ptr.hbm [resolvable:$true] %s177
      %180 = dma.vmem_to_hbm [thread:$0]  %s176, 128, %s178, [#allocation5]
    $region49: #{tpu_custom_call.1} parent=1 // pred_fallthru
      _
    // Predicated region
    $region50: #{tpu_custom_call.1} parent=1 // pred_check
      _
    $region51: #{tpu_custom_call.1} parent=1 // pred_check_branch
      %182 = sbr.rel (0) target = $region53
    $region52: #{tpu_custom_call.1} parent=1 // pred_region
      %184 = dma.done [#allocation5], 128
    $region53: #{tpu_custom_call.1} parent=1 // pred_fallthru
      _
    %185 = vsyncpa [#allocation4], 1
    %186 = vsyncpa [#allocation7], 1
    %187 = vsyncpa [#allocation5], 1

</llo_original>
